<compile_context>
chip_gen: v7x
topology: tpu7x:2x2x1
jax: 0.10.0
libtpu: 0.0.40
codegen_flags: <defaults>
</compile_context>

<pallas_src>
import numpy as np
import jax
import jax.numpy as jnp
from jax.experimental import pallas as pl
from jax.experimental.pallas import tpu as pltpu

FAIL_FLAG = -1


def _label_kernel(fes_ref, tour_ref, cmp_ref, labels_ref, probs_ref):
    # fes_ref:    SMEM (1,) int32          -> first_explained_step (scalar prefetch)
    # tour_ref:   VMEM [vt, st] int32      -> input tour tile
    # cmp_ref:    VMEM [C, vt, st] int32   -> compared tours tile
    # labels_ref: VMEM [vt, st] int32
    # probs_ref:  VMEM [NC, vt, st] int8   -> lane-dense one-hot (NC = C + 1)
    tour = tour_ref[...]                                    # [vt, st]
    C = cmp_ref.shape[0]
    vt, st = tour.shape

    # Running "first match" fold over classes (reverse order so the lowest i wins).
    # Keeps the live set to ~2-3 [vt,st] tiles instead of materializing the full
    # [C,vt,st] match/iota/where/min intermediates (vreg-spill fix).
    label = jnp.full((vt, st), C, dtype=jnp.int32)
    for i in range(C - 1, -1, -1):
        label = jnp.where(cmp_ref[i] == tour, jnp.int32(i), label)

    # only global steps > first_explained_step are explained
    fes = fes_ref[0]
    step_idx = (pl.program_id(1) * st
                + jax.lax.broadcasted_iota(jnp.int32, (vt, st), 1))
    valid = step_idx > fes

    labels_ref[...] = jnp.where(valid, label, jnp.int32(FAIL_FLAG))

    # Per-class one-hot emission: no [NC,vt,st] class-iota intermediate; stores
    # stream class-by-class so the store slot / DMA writeback overlap cleanly.
    for i in range(C + 1):
        probs_ref[i] = ((label == i) & valid).astype(probs_ref.dtype)


def _round_up(x, m):
    return ((x + m - 1) // m) * m


def _select_tiles(V, S, C, probs_itemsize):
    """Pick (vt, st) so the double-buffered block set fits comfortably in VMEM
    on every generation (24 MiB budget < v7x's 32 MiB scoped limit)."""
    per_elem = 4 + 4 * C + 4 + (C + 1) * probs_itemsize     # bytes per (vt*st) element
    budget = 24 * 1024 * 1024                                # double-buffered block budget

    vt = min(64, _round_up(V, 8))
    max_st = budget // (2 * vt * per_elem)
    if max_st < 128:
        # very large C: shrink sublanes first so we keep a full 128-lane tile
        vt = max(8, (budget // (2 * 128 * per_elem)) // 8 * 8)
        max_st = max(128, budget // (2 * vt * per_elem))

    st = min((max_st // 128) * 128, _round_up(S, 128), 2048)
    st = max(st, 128)

    # v7x has 2 TensorCores: make sure a 'parallel' grid axis has >= 2 programs
    # when the problem allows it (no-op on v5e/v6e).
    if pl.cdiv(V, vt) * pl.cdiv(S, st) < 2:
        if V >= 16:
            vt = _round_up((V + 1) // 2, 8)
        elif S >= 256:
            st = _round_up((S + 1) // 2, 128)

    return vt, st, per_elem


def _labels_probs_fallback(input_tours, compared_tours, first_explained_step, probs_dtype):
    """Plain fused XLA path for shapes below one (8,128) tile of real data."""
    input_tours = input_tours.astype(jnp.int32)
    compared_tours = compared_tours.astype(jnp.int32)
    C, V, S = compared_tours.shape
    idx = jnp.arange(C, dtype=jnp.int32)[:, None, None]
    label = jnp.min(
        jnp.where(compared_tours == input_tours[None], idx, jnp.int32(C)), axis=0)
    valid = jnp.arange(S, dtype=jnp.int32)[None, :] > jnp.int32(first_explained_step)
    labels = jnp.where(valid, label, jnp.int32(FAIL_FLAG))
    cls = jnp.arange(C + 1, dtype=jnp.int32)[:, None, None]
    probs = ((cls == label[None]) & valid[None]).astype(probs_dtype)   # [NC, V, S]
    return labels, probs


def ground_truth_labels(input_tours, compared_tours, first_explained_step, *,
                        probs_dtype=jnp.int8, torch_layout=False):
    """input_tours: [V, S] int; compared_tours: [C, V, S] int.

    Returns (labels [V, S] int32, probs).  probs is [C+1, V, S] by default
    (lane-dense, no relayout traffic); pass torch_layout=True to get the
    original module layout [V, S, C+1] (costs one XLA transpose).
    """
    V, S = input_tours.shape
    C = compared_tours.shape[0]
    NC = C + 1

    # tiny-shape fallback: (8,128) minimum tile would be >98% wasted lanes
    if V < 8 or S < 128:
        labels, probs = _labels_probs_fallback(
            input_tours, compared_tours, first_explained_step, probs_dtype)
        if torch_layout:
            probs = jnp.transpose(probs, (1, 2, 0))
        return labels, probs

    probs_itemsize = np.dtype(probs_dtype).itemsize
    vt, st, per_elem = _select_tiles(V, S, C, probs_itemsize)
    blk_bytes = vt * st * per_elem

    tours = input_tours.astype(jnp.int32)
    cmp = compared_tours.astype(jnp.int32)
    fes = jnp.asarray(first_explained_step, dtype=jnp.int32).reshape(1)

    grid = (pl.cdiv(V, vt), pl.cdiv(S, st))
    labels, probs = pl.pallas_call(
        _label_kernel,
        out_shape=(
            jax.ShapeDtypeStruct((V, S), jnp.int32),
            jax.ShapeDtypeStruct((NC, V, S), probs_dtype),
        ),
        grid_spec=pltpu.PrefetchScalarGridSpec(
            num_scalar_prefetch=1,
            grid=grid,
            in_specs=[
                pl.BlockSpec((vt, st), lambda i, j, fes: (i, j)),
                pl.BlockSpec((C, vt, st), lambda i, j, fes: (0, i, j)),
            ],
            out_specs=(
                pl.BlockSpec((vt, st), lambda i, j, fes: (i, j)),
                pl.BlockSpec((NC, vt, st), lambda i, j, fes: (0, i, j)),
            ),
        ),
        compiler_params=pltpu.CompilerParams(
            dimension_semantics=("parallel", "parallel"),
            vmem_limit_bytes=max(32 * 1024 * 1024, 2 * blk_bytes + (2 << 20)),
        ),
    )(fes, tours, cmp)

    if torch_layout:
        # original module layout [num_vehicles, seq_length, num_classes]
        probs = jnp.transpose(probs, (1, 2, 0))
    return labels, probs


def _reference_labels(input_tours, compared_tours, first_explained_step):
    """Pure-numpy reference mirroring GroundTruthBase.get_label semantics."""
    C, V, S = compared_tours.shape
    labels = np.full((V, S), FAIL_FLAG, dtype=np.int32)
    for v in range(V):
        for step in range(first_explained_step + 1, S):
            lab = C
            for i in range(C):
                if input_tours[v, step] == compared_tours[i, v, step]:
                    lab = i
                    break
            labels[v, step] = lab
    return labels


def _make_inputs(key, V, S, C):
    # deterministic synthetic "input tours": per-vehicle permutations of nodes
    k1, k2, k3 = jax.random.split(key, 3)
    input_tours = jnp.stack(
        [jax.random.permutation(jax.random.fold_in(k1, v), S) for v in range(V)]
    ).astype(jnp.int32)                                               # [V, S]
    # deterministic synthetic "compared tours" (stand-in for GeneralSolver output):
    # start from the input tour and perturb some positions so that some steps
    # match and some do not.
    perturb = jax.random.randint(k2, (C, V, S), 0, S, dtype=jnp.int32)
    use_input = jax.random.bernoulli(k3, 0.5, (C, V, S))
    compared_tours = jnp.where(use_input, input_tours[None], perturb).astype(jnp.int32)
    return input_tours, compared_tours


def _check(input_tours, compared_tours, first_explained_step, labels, probs):
    C, V, S = compared_tours.shape
    ref = _reference_labels(np.asarray(input_tours), np.asarray(compared_tours),
                            first_explained_step)
    np.testing.assert_array_equal(np.asarray(labels), ref)
    ref_probs = np.zeros((C + 1, V, S), dtype=np.int8)
    for v in range(V):
        for s in range(first_explained_step + 1, S):
            ref_probs[ref[v, s], v, s] = 1
    np.testing.assert_array_equal(np.asarray(probs).astype(np.int8), ref_probs)
    return ref, ref_probs


if __name__ == "__main__":
    key = jax.random.PRNGKey(0)

    # ---- Pallas kernel path (small but tileable shapes) ----
    V, S, C = 8, 256, 3          # num_vehicles, seq_length, num_compared_problems
    fes = 0                      # first_explained_step
    input_tours, compared_tours = _make_inputs(jax.random.fold_in(key, 0), V, S, C)

    labels, probs = ground_truth_labels(input_tours, compared_tours, fes)
    labels = jax.block_until_ready(labels)
    probs = jax.block_until_ready(probs)
    assert labels.shape == (V, S)
    assert probs.shape == (C + 1, V, S)
    _check(input_tours, compared_tours, fes, labels, probs)

    # ---- tiny-shape fallback path (module-sized demo: 2 vehicles x 8 steps) ----
    V2, S2, C2 = 2, 8, 2
    it2, ct2 = _make_inputs(jax.random.fold_in(key, 1), V2, S2, C2)
    labels2, probs2 = ground_truth_labels(it2, ct2, fes, torch_layout=True)
    labels2 = jax.block_until_ready(labels2)
    probs2 = jax.block_until_ready(probs2)
    assert labels2.shape == (V2, S2)
    assert probs2.shape == (V2, S2, C2 + 1)
    _check(it2, ct2, fes, labels2, np.transpose(np.asarray(probs2), (2, 0, 1)))

    print("KERNEL_OK")
</pallas_src>

<mosaic_0001>
module attributes {stable_mosaic.version = 11 : i64} {
  func.func @_label_kernel(%arg0: i32, %arg1: i32, %arg2: memref<1xi32, #tpu.memory_space<smem>>, %arg3: memref<8x128xi32, #tpu.memory_space<vmem>>, %arg4: memref<3x8x128xi32, #tpu.memory_space<vmem>>, %arg5: memref<8x128xi32, #tpu.memory_space<vmem>>, %arg6: memref<4x8x128xi8, #tpu.memory_space<vmem>>) attributes {dimension_semantics = [#tpu.dimension_semantics<parallel>, #tpu.dimension_semantics<parallel>], iteration_bounds = array<i64: 1, 2>, scalar_prefetch = 1 : i64, scratch_operands = 0 : i64, tpu.core_type = #tpu.core_type<tc>, window_params = [{transform_indices = @transform_0, window_bounds = array<i64: 8, 128>}, {transform_indices = @transform_1, window_bounds = array<i64: 3, 8, 128>}, {transform_indices = @transform_2, window_bounds = array<i64: 8, 128>}, {transform_indices = @transform_3, window_bounds = array<i64: 4, 8, 128>}]} {
    %c0 = arith.constant 0 : index
    %c0_0 = arith.constant 0 : index
    %0 = vector.load %arg3[%c0, %c0_0] : memref<8x128xi32, #tpu.memory_space<vmem>>, vector<8x128xi32>
    %c3_i32 = arith.constant 3 : i32
    %1 = vector.broadcast %c3_i32 : i32 to vector<8x128xi32>
    %c2 = arith.constant 2 : index
    %c0_1 = arith.constant 0 : index
    %c0_2 = arith.constant 0 : index
    %2 = vector.load %arg4[%c2, %c0_1, %c0_2] : memref<3x8x128xi32, #tpu.memory_space<vmem>>, vector<1x8x128xi32>
    %3 = vector.shape_cast %2 : vector<1x8x128xi32> to vector<8x128xi32>
    %4 = arith.cmpi eq, %3, %0 : vector<8x128xi32>
    %c2_i32 = arith.constant 2 : i32
    %5 = vector.broadcast %c2_i32 : i32 to vector<8x128xi32>
    %6 = arith.select %4, %5, %1 : vector<8x128xi1>, vector<8x128xi32>
    %c1 = arith.constant 1 : index
    %c0_3 = arith.constant 0 : index
    %c0_4 = arith.constant 0 : index
    %7 = vector.load %arg4[%c1, %c0_3, %c0_4] : memref<3x8x128xi32, #tpu.memory_space<vmem>>, vector<1x8x128xi32>
    %8 = vector.shape_cast %7 : vector<1x8x128xi32> to vector<8x128xi32>
    %9 = arith.cmpi eq, %8, %0 : vector<8x128xi32>
    %c1_i32 = arith.constant 1 : i32
    %10 = vector.broadcast %c1_i32 : i32 to vector<8x128xi32>
    %11 = arith.select %9, %10, %6 : vector<8x128xi1>, vector<8x128xi32>
    %c0_5 = arith.constant 0 : index
    %c0_6 = arith.constant 0 : index
    %c0_7 = arith.constant 0 : index
    %12 = vector.load %arg4[%c0_5, %c0_6, %c0_7] : memref<3x8x128xi32, #tpu.memory_space<vmem>>, vector<1x8x128xi32>
    %13 = vector.shape_cast %12 : vector<1x8x128xi32> to vector<8x128xi32>
    %14 = arith.cmpi eq, %13, %0 : vector<8x128xi32>
    %c0_i32 = arith.constant 0 : i32
    %15 = vector.broadcast %c0_i32 : i32 to vector<8x128xi32>
    %16 = arith.select %14, %15, %11 : vector<8x128xi1>, vector<8x128xi32>
    %c0_8 = arith.constant 0 : index
    %17 = memref.load %arg2[%c0_8] : memref<1xi32, #tpu.memory_space<smem>>
    %c128_i32 = arith.constant 128 : i32
    %18 = arith.muli %arg1, %c128_i32 : i32
    %19 = tpu.iota {dimensions = array<i32: 1>} : vector<8x128xi32>
    %20 = vector.broadcast %18 : i32 to vector<8x128xi32>
    %21 = arith.addi %20, %19 : vector<8x128xi32>
    %22 = vector.broadcast %17 : i32 to vector<8x128xi32>
    %23 = arith.cmpi sgt, %21, %22 : vector<8x128xi32>
    %c-1_i32 = arith.constant -1 : i32
    %24 = vector.broadcast %c-1_i32 : i32 to vector<8x128xi32>
    %25 = arith.select %23, %16, %24 : vector<8x128xi1>, vector<8x128xi32>
    %c0_9 = arith.constant 0 : index
    %c0_10 = arith.constant 0 : index
    %26 = vector.load %arg5[%c0_9, %c0_10] : memref<8x128xi32, #tpu.memory_space<vmem>>, vector<8x128xi32>
    tpu.vector_store %arg5[%c0_9, %c0_10], %25 {strides = array<i32>} : memref<8x128xi32, #tpu.memory_space<vmem>>, vector<8x128xi32>,
    %c0_i32_11 = arith.constant 0 : i32
    %27 = vector.broadcast %c0_i32_11 : i32 to vector<8x128xi32>
    %28 = arith.cmpi eq, %16, %27 : vector<8x128xi32>
    %29 = arith.andi %28, %23 : vector<8x128xi1>
    %30 = arith.extui %29 : vector<8x128xi1> to vector<8x128xi8>
    %c0_12 = arith.constant 0 : index
    %c0_13 = arith.constant 0 : index
    %c0_14 = arith.constant 0 : index
    %31 = vector.load %arg6[%c0_12, %c0_13, %c0_14] : memref<4x8x128xi8, #tpu.memory_space<vmem>>, vector<1x8x128xi8>
    %32 = vector.shape_cast %31 : vector<1x8x128xi8> to vector<8x128xi8>
    %33 = vector.shape_cast %30 : vector<8x128xi8> to vector<1x8x128xi8>
    tpu.vector_store %arg6[%c0_12, %c0_13, %c0_14], %33 {strides = array<i32>} : memref<4x8x128xi8, #tpu.memory_space<vmem>>, vector<1x8x128xi8>,
    %c1_i32_15 = arith.constant 1 : i32
    %34 = vector.broadcast %c1_i32_15 : i32 to vector<8x128xi32>
    %35 = arith.cmpi eq, %16, %34 : vector<8x128xi32>
    %36 = arith.andi %35, %23 : vector<8x128xi1>
    %37 = arith.extui %36 : vector<8x128xi1> to vector<8x128xi8>
    %c1_16 = arith.constant 1 : index
    %c0_17 = arith.constant 0 : index
    %c0_18 = arith.constant 0 : index
    %38 = vector.load %arg6[%c1_16, %c0_17, %c0_18] : memref<4x8x128xi8, #tpu.memory_space<vmem>>, vector<1x8x128xi8>
    %39 = vector.shape_cast %38 : vector<1x8x128xi8> to vector<8x128xi8>
    %40 = vector.shape_cast %37 : vector<8x128xi8> to vector<1x8x128xi8>
    tpu.vector_store %arg6[%c1_16, %c0_17, %c0_18], %40 {strides = array<i32>} : memref<4x8x128xi8, #tpu.memory_space<vmem>>, vector<1x8x128xi8>,
    %c2_i32_19 = arith.constant 2 : i32
    %41 = vector.broadcast %c2_i32_19 : i32 to vector<8x128xi32>
    %42 = arith.cmpi eq, %16, %41 : vector<8x128xi32>
    %43 = arith.andi %42, %23 : vector<8x128xi1>
    %44 = arith.extui %43 : vector<8x128xi1> to vector<8x128xi8>
    %c2_20 = arith.constant 2 : index
    %c0_21 = arith.constant 0 : index
    %c0_22 = arith.constant 0 : index
    %45 = vector.load %arg6[%c2_20, %c0_21, %c0_22] : memref<4x8x128xi8, #tpu.memory_space<vmem>>, vector<1x8x128xi8>
    %46 = vector.shape_cast %45 : vector<1x8x128xi8> to vector<8x128xi8>
    %47 = vector.shape_cast %44 : vector<8x128xi8> to vector<1x8x128xi8>
    tpu.vector_store %arg6[%c2_20, %c0_21, %c0_22], %47 {strides = array<i32>} : memref<4x8x128xi8, #tpu.memory_space<vmem>>, vector<1x8x128xi8>,
    %c3_i32_23 = arith.constant 3 : i32
    %48 = vector.broadcast %c3_i32_23 : i32 to vector<8x128xi32>
    %49 = arith.cmpi eq, %16, %48 : vector<8x128xi32>
    %50 = arith.andi %49, %23 : vector<8x128xi1>
    %51 = arith.extui %50 : vector<8x128xi1> to vector<8x128xi8>
    %c3 = arith.constant 3 : index
    %c0_24 = arith.constant 0 : index
    %c0_25 = arith.constant 0 : index
    %52 = vector.load %arg6[%c3, %c0_24, %c0_25] : memref<4x8x128xi8, #tpu.memory_space<vmem>>, vector<1x8x128xi8>
    %53 = vector.shape_cast %52 : vector<1x8x128xi8> to vector<8x128xi8>
    %54 = vector.shape_cast %51 : vector<8x128xi8> to vector<1x8x128xi8>
    tpu.vector_store %arg6[%c3, %c0_24, %c0_25], %54 {strides = array<i32>} : memref<4x8x128xi8, #tpu.memory_space<vmem>>, vector<1x8x128xi8>,
    return
  }
  func.func @transform_0(%arg0: i32, %arg1: i32, %arg2: memref<1xi32, #tpu.memory_space<smem>>) -> (i32, i32) {
    %c0_i32 = arith.constant 0 : i32
    return %arg0, %arg1 : i32, i32
  }
  func.func @transform_1(%arg0: i32, %arg1: i32, %arg2: memref<1xi32, #tpu.memory_space<smem>>) -> (i32, i32, i32) {
    %c0_i32 = arith.constant 0 : i32
    %c0_i32_0 = arith.constant 0 : i32
    return %c0_i32, %arg0, %arg1 : i32, i32, i32
  }
  func.func @transform_2(%arg0: i32, %arg1: i32, %arg2: memref<1xi32, #tpu.memory_space<smem>>) -> (i32, i32) {
    %c0_i32 = arith.constant 0 : i32
    return %arg0, %arg1 : i32, i32
  }
  func.func @transform_3(%arg0: i32, %arg1: i32, %arg2: memref<1xi32, #tpu.memory_space<smem>>) -> (i32, i32, i32) {
    %c0_i32 = arith.constant 0 : i32
    %c0_i32_0 = arith.constant 0 : i32
    return %c0_i32, %arg0, %arg1 : i32, i32, i32
  }
}

</mosaic_0001>

<llo_original>
// kernel: tpu_custom_call.1
$region0: #{tpu_custom_call.1}
  #allocation0 [shape = 'u32[]', space=smem, size = 0x4, offset = 0x4, fixed_abs, tag = 'smem constant byte address 0x4 - core index']
  #allocation1 [shape = 'u32[144,128]{1,0:T(1,128)}', space=vmem, size = 0x12000, scoped, tag = 'internal scratch']
  #allocation2 [shape = 's32[1]{0}', space=sflag, size = 0x4, scoped, tag = 'scoped memory for tpu_custom_call.1']
  #allocation3 [shape = 's32[1]{0:T(128)S(6)}', space=smem, size = 0x200, scoped, tag = 'prefetched SMEM operand 0']
  %s0 = inlined_call_operand.<no memory space> [shape: s32[1], index: 0, kind: input, shape index: {}]
  %s1 = inlined_call_operand.hbm [shape: s32[8,256], index: 1, kind: input, shape index: {}]
  %s2 = inlined_call_operand.hbm [shape: s32[3,8,256], index: 2, kind: input, shape index: {}]
  %s3 = inlined_call_operand.hbm [shape: s32[8,256], index: 3, kind: output, shape index: {0}]
  %s4 = inlined_call_operand.hbm [shape: s8[4,8,256], index: 4, kind: output, shape index: {1}]
  %5 = xla_tuple %s3, %s4
  %s6 = sld [smem:[#allocation0]]
  $region57: #{tpu_custom_call.1} parent=0
    _
  %s8 = ssub.s32 1, %s6
  %s9 = scalar_select 0, %s8, %s6
  %10 = sst [smem:[#allocation3]] %s0
  $region1: #{tpu_custom_call.1} parent=0
    #allocation4 [shape = 'u8[8192]{0}', space=vmem, size = 0x2000, scoped, tag = 'input window, operand 1']
    #allocation5 [shape = 's32[2]{0}', space=sflag, size = 0x8, scoped, tag = 'scoped memory for tpu_custom_call.1']
    #allocation6 [shape = 's32[2]{0}', space=sflag, size = 0x8, scoped, tag = 'scoped memory for tpu_custom_call.1']
    #allocation7 [shape = 'u8[24576]{0}', space=vmem, size = 0x6000, scoped, tag = 'input window, operand 2']
    #allocation8 [shape = 's32[2]{0}', space=sflag, size = 0x8, scoped, tag = 'scoped memory for tpu_custom_call.1']
    #allocation9 [shape = 'u8[8192]{0}', space=vmem, size = 0x2000, scoped, tag = 'output window, operand 0']
    #allocation10 [shape = 'u8[8192]{0}', space=vmem, size = 0x2000, scoped, tag = 'output window, operand 1']
    #allocation11 [shape = 's32[2]{0}', space=sflag, size = 0x8, scoped, tag = 'scoped memory for tpu_custom_call.1']
    %11 = vsyncpa [#allocation5], 0
    %s12 = scalar_lea.sflag [#allocation5], 1
    %13 = vsyncpa %s12, 0
    %14 = vsyncpa [#allocation8], 0
    %s15 = scalar_lea.sflag [#allocation8], 1
    %16 = vsyncpa %s15, 0
    %17 = vsyncpa [#allocation6], 0
    %s18 = scalar_lea.sflag [#allocation6], 1
    %19 = vsyncpa %s18, 0
    %20 = vsyncpa [#allocation11], 0
    %s21 = scalar_lea.sflag [#allocation11], 1
    %22 = vsyncpa %s21, 0
    loop: start=0, step=1, limit=4
    $region2: #{tpu_custom_call.1} parent=1 // loop_pre_header
      _
    $region3: #{tpu_custom_call.1} parent=1 // loop_header
      %s24 = sphi 0, %s28
      %p25 = scmp.ge.s32.totalorder %s24, 4
      %s31 = sphi 0, %s43
      %s32 = sphi 0, %s39
      %s33 = sphi 0, %s31
      %s34 = sphi 0, %s32
      %s35 = sphi 0, %s33
      %s36 = sphi 0, %s34
      %s48 = sphi 0, %s50
      %s51 = sphi 0, %s48
      %s52 = sphi 0, %s51
      %s68 = sphi 0, %s52
      %s76 = sphi 0, %s78
      %s79 = sphi 0, %s76
      %s80 = sphi 0, %s79
      %s96 = sphi 0, %s80
      %s104 = sphi 0, %s106
      %s107 = sphi 0, %s104
      %s108 = sphi 0, %s107
      %s124 = sphi 0, %s108
      %s132 = sphi 0, %s134
      %s135 = sphi 0, %s132
      %s136 = sphi 0, %s135
      %s152 = sphi 0, %s136
    $region4: #{tpu_custom_call.1} parent=1 // loop_header_branch
      %27 = sbr.rel (%p25) target = $region8
    $region5: #{tpu_custom_call.1} parent=1 // loop_body
      %s29 = ssub.s32 %s24, 1
      %s30 = ssub.s32 %s24, 2
      %s37 = sadd.s32 1, %s32
      %p38 = scmp.ge.s32.totalorder %s37, 2
      %s39 = scalar_select %p38, 0, %s37
      %s40 = sadd.s32 1, %s31
      %s41 = scalar_select %p38, %s40, %s31
      %p42 = scmp.ge.s32.totalorder %s41, 1
      %s43 = scalar_select %p42, 0, %s41
      %s44 = ssub.s32 %s31, %s43
      %s45 = ssub.s32 %s32, %s39
      %s46 = sor.u32 %s44, %s45
      %p47 = scmp.eq.s32.totalorder %s46, 0
      %s49 = sadd.s32 %s48, 1
      %s50 = scalar_select %p47, %s48, %s49
      %p53 = pneg %p47
      %p54 = scmp.eq.s32.totalorder %s24, 1
      %p55 = por %p53, %p54
      %p56 = scmp.ne.s32.totalorder %s48, %s51
      %p57 = scmp.eq.s32.totalorder %s24, 0
      %p58 = por %p56, %p57
      %p59 = scmp.ne.s32.totalorder %s48, %s51
      %p60 = scmp.eq.s32.totalorder %s29, 1
      %p61 = por %p59, %p60
      %p62 = scmp.ne.s32.totalorder %s51, %s52
      %p63 = scmp.eq.s32.totalorder %s29, 0
      %p64 = por %p62, %p63
      %p65 = scmp.ne.s32.totalorder %s51, %s52
      %p66 = scmp.eq.s32.totalorder %s30, 1
      %p67 = por %p65, %p66
      %p69 = scmp.ne.s32.totalorder %s52, %s68
      %p70 = scmp.eq.s32.totalorder %s30, 0
      %p71 = por %p69, %p70
      %s72 = ssub.s32 %s31, %s43
      %s73 = ssub.s32 %s32, %s39
      %s74 = sor.u32 %s72, %s73
      %p75 = scmp.eq.s32.totalorder %s74, 0
      %s77 = sadd.s32 %s76, 1
      %s78 = scalar_select %p75, %s76, %s77
      %p81 = pneg %p75
      %p82 = scmp.eq.s32.totalorder %s24, 1
      %p83 = por %p81, %p82
      %p84 = scmp.ne.s32.totalorder %s76, %s79
      %p85 = scmp.eq.s32.totalorder %s24, 0
      %p86 = por %p84, %p85
      %p87 = scmp.ne.s32.totalorder %s76, %s79
      %p88 = scmp.eq.s32.totalorder %s29, 1
      %p89 = por %p87, %p88
      %p90 = scmp.ne.s32.totalorder %s79, %s80
      %p91 = scmp.eq.s32.totalorder %s29, 0
      %p92 = por %p90, %p91
      %p93 = scmp.ne.s32.totalorder %s79, %s80
      %p94 = scmp.eq.s32.totalorder %s30, 1
      %p95 = por %p93, %p94
      %p97 = scmp.ne.s32.totalorder %s80, %s96
      %p98 = scmp.eq.s32.totalorder %s30, 0
      %p99 = por %p97, %p98
      %s100 = ssub.s32 %s31, %s43
      %s101 = ssub.s32 %s32, %s39
      %s102 = sor.u32 %s100, %s101
      %p103 = scmp.eq.s32.totalorder %s102, 0
      %s105 = sadd.s32 %s104, 1
      %s106 = scalar_select %p103, %s104, %s105
      %p109 = pneg %p103
      %p110 = scmp.eq.s32.totalorder %s24, 1
      %p111 = por %p109, %p110
      %p112 = scmp.ne.s32.totalorder %s104, %s107
      %p113 = scmp.eq.s32.totalorder %s24, 0
      %p114 = por %p112, %p113
      %p115 = scmp.ne.s32.totalorder %s104, %s107
      %p116 = scmp.eq.s32.totalorder %s29, 1
      %p117 = por %p115, %p116
      %p118 = scmp.ne.s32.totalorder %s107, %s108
      %p119 = scmp.eq.s32.totalorder %s29, 0
      %p120 = por %p118, %p119
      %p121 = scmp.ne.s32.totalorder %s107, %s108
      %p122 = scmp.eq.s32.totalorder %s30, 1
      %p123 = por %p121, %p122
      %p125 = scmp.ne.s32.totalorder %s108, %s124
      %p126 = scmp.eq.s32.totalorder %s30, 0
      %p127 = por %p125, %p126
      %s128 = ssub.s32 %s31, %s43
      %s129 = ssub.s32 %s32, %s39
      %s130 = sor.u32 %s128, %s129
      %p131 = scmp.eq.s32.totalorder %s130, 0
      %s133 = sadd.s32 %s132, 1
      %s134 = scalar_select %p131, %s132, %s133
      %p137 = pneg %p131
      %p138 = scmp.eq.s32.totalorder %s24, 1
      %p139 = por %p137, %p138
      %p140 = scmp.ne.s32.totalorder %s132, %s135
      %p141 = scmp.eq.s32.totalorder %s24, 0
      %p142 = por %p140, %p141
      %p143 = scmp.ne.s32.totalorder %s132, %s135
      %p144 = scmp.eq.s32.totalorder %s29, 1
      %p145 = por %p143, %p144
      %p146 = scmp.ne.s32.totalorder %s135, %s136
      %p147 = scmp.eq.s32.totalorder %s29, 0
      %p148 = por %p146, %p147
      %p149 = scmp.ne.s32.totalorder %s135, %s136
      %p150 = scmp.eq.s32.totalorder %s30, 1
      %p151 = por %p149, %p150
      %p153 = scmp.ne.s32.totalorder %s136, %s152
      %p154 = scmp.eq.s32.totalorder %s30, 0
      %p155 = por %p153, %p154
      %p156 = scmp.le.s32.totalorder 1, %s24
      %p157 = scmp.lt.s32.totalorder %s24, 3
      %p158 = pnand %p156, %p157
      %p159 = pneg %p158
      // Predicated region
      $region9: #{tpu_custom_call.1} parent=5 // pred_check
        _
      $region10: #{tpu_custom_call.1} parent=5 // pred_check_branch
        %161 = sbr.rel (%p158) target = $region12
      $region11: #{tpu_custom_call.1} parent=5 // pred_region
        %s162 = ssub.s32 %s24, 1
      $region12: #{tpu_custom_call.1} parent=5 // pred_fallthru
        _
      %p163 = scmp.lt.s32.totalorder %s24, 2
      // Predicated region
      $region13: #{tpu_custom_call.1} parent=5 // pred_check
        %p164 = pneg %p163
      $region14: #{tpu_custom_call.1} parent=5 // pred_check_branch
        %166 = sbr.rel (%p164) target = $region16
      $region15: #{tpu_custom_call.1} parent=5 // pred_region
        // Predicated region
        $region17: #{tpu_custom_call.1} parent=15 // pred_check
          %p167 = pneg %p58
        $region18: #{tpu_custom_call.1} parent=15 // pred_check_branch
          %169 = sbr.rel (%p167) target = $region20
        $region19: #{tpu_custom_call.1} parent=15 // pred_region
          %s170 = sand.u32 %s48, 1
          %s171 = scalar_lea.sflag [#allocation5], %s170
          %s172 = sand.u32 %s48, 1
          %s173 = smul.addr %s172, 8
          %s174 = scalar_lea.vmem [#allocation4], %s173
          %s176 = ssub.s32 128, 128
          %177 = vsyncadd %s171, %s176
          %s178 = smul.addr %s31, 2
          %s179 = sadd.s32 %s32, %s178
          %s180 = smul.addr %s179, 128
          %s181 = scalar_lea.hbm %s1, %s180
          %s183 = sshll.u32 %s174, 4
          %s184 = int_to_ptr.vmem [resolvable:$true] %s183
          %186 = dma.hbm_to_vmem [thread:$0]  %s181, 128, %s184, %s171
        $region20: #{tpu_custom_call.1} parent=15 // pred_fallthru
          _
        // Predicated region
        $region21: #{tpu_custom_call.1} parent=15 // pred_check
          %p187 = pneg %p86
        $region22: #{tpu_custom_call.1} parent=15 // pred_check_branch
          %189 = sbr.rel (%p187) target = $region24
        $region23: #{tpu_custom_call.1} parent=15 // pred_region
          %s190 = sand.u32 %s76, 1
          %s191 = scalar_lea.sflag [#allocation8], %s190
          %s192 = sand.u32 %s76, 1
          %s193 = smul.addr %s192, 24
          %s194 = scalar_lea.vmem [#allocation7], %s193
          %s196 = ssub.s32 384, 384
          %197 = vsyncadd %s191, %s196
          %s198 = smul.addr %s31, 2
          %s199 = sadd.s32 %s32, %s198
          %s200 = smul.addr %s199, 128
          %s201 = scalar_lea.hbm %s2, %s200
          %s202 = sshll.u32 %s194, 4
          %s203 = int_to_ptr.vmem [resolvable:$true] %s202
          %208 = dma.hbm_to_vmem [thread:$0]  %s201, 384, %s203, %s191, 256, 128, 8
        $region24: #{tpu_custom_call.1} parent=15 // pred_fallthru
          _
      $region16: #{tpu_custom_call.1} parent=5 // pred_fallthru
        _
      %p209 = scmp.le.s32.totalorder 1, %s24
      %p210 = scmp.lt.s32.totalorder %s24, 3
      %p211 = pnand %p209, %p210
      %p212 = pneg %p211
      // Predicated region
      $region25: #{tpu_custom_call.1} parent=5 // pred_check
        _
      $region26: #{tpu_custom_call.1} parent=5 // pred_check_branch
        %214 = sbr.rel (%p211) target = $region28
      $region27: #{tpu_custom_call.1} parent=5 // pred_region
        %s215 = ssub.s32 %s24, 1
        %s216 = sand.u32 %s51, 1
        %s217 = scalar_lea.sflag [#allocation5], %s216
        %s218 = sand.u32 %s51, 1
        %s219 = smul.addr %s218, 8
        %s220 = scalar_lea.vmem [#allocation4], %s219
        // Predicated region
        $region29: #{tpu_custom_call.1} parent=27 // pred_check
          %p221 = pneg %p64
        $region30: #{tpu_custom_call.1} parent=27 // pred_check_branch
          %223 = sbr.rel (%p221) target = $region32
        $region31: #{tpu_custom_call.1} parent=27 // pred_region
          %224 = dma.done %s217, 128
        $region32: #{tpu_custom_call.1} parent=27 // pred_fallthru
          _
        %s225 = sand.u32 %s79, 1
        %s226 = scalar_lea.sflag [#allocation8], %s225
        %s227 = sand.u32 %s79, 1
        %s228 = smul.addr %s227, 24
        %s229 = scalar_lea.vmem [#allocation7], %s228
        // Predicated region
        $region33: #{tpu_custom_call.1} parent=27 // pred_check
          %p230 = pneg %p92
        $region34: #{tpu_custom_call.1} parent=27 // pred_check_branch
          %232 = sbr.rel (%p230) target = $region36
        $region35: #{tpu_custom_call.1} parent=27 // pred_region
          %233 = dma.done %s226, 384
        $region36: #{tpu_custom_call.1} parent=27 // pred_fallthru
          _
        %s234 = sand.u32 %s51, 1
        %s235 = scalar_lea.sflag [#allocation5], %s234
        %s236 = sand.u32 %s51, 1
        %s237 = smul.addr %s236, 8
        %s238 = scalar_lea.vmem [#allocation4], %s237
        %p239 = pneg %p64
        %p240 = pneg %p61
        %s241 = sand.u32 %s79, 1
        %s242 = scalar_lea.sflag [#allocation8], %s241
        %s243 = sand.u32 %s79, 1
        %s244 = smul.addr %s243, 24
        %s245 = scalar_lea.vmem [#allocation7], %s244
        %p246 = pneg %p92
        %p247 = pneg %p89
        %p248 = pneg %p120
        %p249 = pneg %p117
        %s250 = sand.u32 %s107, 1
        %s251 = scalar_lea.sflag [#allocation6], %s250
        %s252 = sand.u32 %s107, 1
        %s253 = smul.addr %s252, 8
        %s254 = scalar_lea.vmem [#allocation9], %s253
        %p255 = pneg %p148
        %p256 = pneg %p145
        %s257 = sand.u32 %s135, 1
        %s258 = scalar_lea.sflag [#allocation11], %s257
        %s259 = sand.u32 %s135, 1
        %s260 = smul.addr %s259, 8
        %s261 = scalar_lea.vmem [#allocation10], %s260
        %v264 = vld [vmem:[%s220] sm:$0xff]
        %s265 = scalar_lea.vmem %s229, 16 [#allocation7]
        %v266 = vld [vmem:[%s265] sm:$0xff]
        %vm267 = vcmp.eq.s32.totalorder %v266, %v264
        %v268 = vsel %vm267, 2, 3
        %s269 = scalar_lea.vmem %s229, 8 [#allocation7]
        %v270 = vld [vmem:[%s269] sm:$0xff]
        %vm271 = vcmp.eq.s32.totalorder %v270, %v264
        %v272 = vsel %vm271, 1, %v268
        %v273 = vld [vmem:[%s229] sm:$0xff]
        %vm274 = vcmp.eq.s32.totalorder %v273, %v264
        %v275 = vsel %vm274, 0, %v272
        %s276 = sld [smem:[#allocation3]]
        %s277 = smul.u32 %s34, 128
        %v278 = vlaneseq
        %v279 = vand.u32 %v278, 127
        %v280 = vstv %s277
        %v281 = vadd.s32 %v280, %v279
        %v282 = vstv %s276
        %vm283 = vcmp.gt.s32.totalorder %v281, %v282
        %v284 = vsel %vm283, %v275, 4294967295
        %285 = vst [vmem:[%s254] sm:$0xff] %v284
        %vm286 = vcmp.eq.s32.totalorder %v275, 0
        %vm287 = vmand %vm286, %vm283
        %vm288 = vmpackc.low %vm287, %vm287
        %vm289 = vmpackc.even %vm288, %vm288
        %v290 = vsel %vm289, 16843009, 0
        %291 = vst [vmem:[%s261] sm:$0x3] %v290
        %vm292 = vcmp.eq.s32.totalorder %v275, 1
        %vm293 = vmand %vm292, %vm283
        %vm294 = vmpackc.low %vm293, %vm293
        %vm295 = vmpackc.even %vm294, %vm294
        %v296 = vsel %vm295, 16843009, 0
        %s297 = scalar_lea.vmem %s261, 2 [#allocation10]
        %298 = vst [vmem:[%s297] sm:$0x3] %v296
        %vm299 = vcmp.eq.s32.totalorder %v275, 2
        %vm300 = vmand %vm299, %vm283
        %vm301 = vmpackc.low %vm300, %vm300
        %vm302 = vmpackc.even %vm301, %vm301
        %v303 = vsel %vm302, 16843009, 0
        %s304 = scalar_lea.vmem %s261, 4 [#allocation10]
        %305 = vst [vmem:[%s304] sm:$0x3] %v303
        %vm306 = vcmp.eq.s32.totalorder %v275, 3
        %vm307 = vmand %vm306, %vm283
        %vm308 = vmpackc.low %vm307, %vm307
        %vm309 = vmpackc.even %vm308, %vm308
        %v310 = vsel %vm309, 16843009, 0
        %s311 = scalar_lea.vmem %s261, 6 [#allocation10]
        %312 = vst [vmem:[%s311] sm:$0x3] %v310
        %s313 = sand.u32 %s107, 1
        %s314 = scalar_lea.sflag [#allocation6], %s313
        %s315 = sand.u32 %s107, 1
        %s316 = smul.addr %s315, 8
        %s317 = scalar_lea.vmem [#allocation9], %s316
        %s318 = sand.u32 %s135, 1
        %s319 = scalar_lea.sflag [#allocation11], %s318
        %s320 = sand.u32 %s135, 1
        %s321 = smul.addr %s320, 8
        %s322 = scalar_lea.vmem [#allocation10], %s321
        // Predicated region
        $region37: #{tpu_custom_call.1} parent=27 // pred_check
          %p323 = pneg %p117
        $region38: #{tpu_custom_call.1} parent=27 // pred_check_branch
          %325 = sbr.rel (%p323) target = $region40
        $region39: #{tpu_custom_call.1} parent=27 // pred_region
          %s327 = ssub.s32 128, 128
          %328 = vsyncadd %s314, %s327
          %s329 = smul.addr %s33, 2
          %s330 = sadd.s32 %s34, %s329
          %s331 = smul.addr %s330, 128
          %s332 = scalar_lea.hbm %s3, %s331
          %s334 = sshll.u32 %s317, 4
          %s335 = int_to_ptr.vmem [resolvable:$true] %s334
          %337 = dma.vmem_to_hbm [thread:$0]  %s335, 128, %s332, %s314
        $region40: #{tpu_custom_call.1} parent=27 // pred_fallthru
          _
        // Predicated region
        $region41: #{tpu_custom_call.1} parent=27 // pred_check
          %p338 = pneg %p145
        $region42: #{tpu_custom_call.1} parent=27 // pred_check_branch
          %340 = sbr.rel (%p338) target = $region44
        $region43: #{tpu_custom_call.1} parent=27 // pred_region
          %s342 = ssub.s32 128, 128
          %343 = vsyncadd %s319, %s342
          %s344 = smul.addr %s33, 2
          %s345 = sadd.s32 %s34, %s344
          %s346 = smul.addr %s345, 32
          %s347 = scalar_lea.hbm %s4, %s346
          %s348 = sshll.u32 %s322, 4
          %s349 = int_to_ptr.vmem [resolvable:$true] %s348
          %354 = dma.vmem_to_hbm [thread:$0]  %s349, 128, %s347, %s319, 32, 64, 2
        $region44: #{tpu_custom_call.1} parent=27 // pred_fallthru
          _
      $region28: #{tpu_custom_call.1} parent=5 // pred_fallthru
        _
      %p355 = scmp.le.s32.totalorder 2, %s24
      // Predicated region
      $region45: #{tpu_custom_call.1} parent=5 // pred_check
        %p356 = pneg %p355
      $region46: #{tpu_custom_call.1} parent=5 // pred_check_branch
        %358 = sbr.rel (%p356) target = $region48
      $region47: #{tpu_custom_call.1} parent=5 // pred_region
        %s359 = ssub.s32 %s24, 2
        // Predicated region
        $region49: #{tpu_custom_call.1} parent=47 // pred_check
          %p360 = pneg %p123
        $region50: #{tpu_custom_call.1} parent=47 // pred_check_branch
          %362 = sbr.rel (%p360) target = $region52
        $region51: #{tpu_custom_call.1} parent=47 // pred_region
          %s363 = sand.u32 %s108, 1
          %s364 = scalar_lea.sflag [#allocation6], %s363
          %s365 = sand.u32 %s108, 1
          %s366 = smul.addr %s365, 8
          %s367 = scalar_lea.vmem [#allocation9], %s366
          %368 = dma.done %s364, 128
        $region52: #{tpu_custom_call.1} parent=47 // pred_fallthru
          _
        // Predicated region
        $region53: #{tpu_custom_call.1} parent=47 // pred_check
          %p369 = pneg %p151
        $region54: #{tpu_custom_call.1} parent=47 // pred_check_branch
          %371 = sbr.rel (%p369) target = $region56
        $region55: #{tpu_custom_call.1} parent=47 // pred_region
          %s372 = sand.u32 %s136, 1
          %s373 = scalar_lea.sflag [#allocation11], %s372
          %s374 = sand.u32 %s136, 1
          %s375 = smul.addr %s374, 8
          %s376 = scalar_lea.vmem [#allocation10], %s375
          %377 = dma.done %s373, 128
        $region56: #{tpu_custom_call.1} parent=47 // pred_fallthru
          _
      $region48: #{tpu_custom_call.1} parent=5 // pred_fallthru
        _
    $region6: #{tpu_custom_call.1} parent=1 // loop_footer
      %s28 = sadd.s32 1, %s24
    $region7: #{tpu_custom_call.1} parent=1 // loop_footer_branch
      %23 = sbr.rel target = $region3
    $region8: #{tpu_custom_call.1} parent=1 // loop_exit
      _
    %378 = vsyncpa [#allocation5], 1
    %s379 = scalar_lea.sflag [#allocation5], 1
    %380 = vsyncpa %s379, 1
    %381 = vsyncpa [#allocation8], 1
    %s382 = scalar_lea.sflag [#allocation8], 1
    %383 = vsyncpa %s382, 1
    %384 = vsyncpa [#allocation6], 1
    %s385 = scalar_lea.sflag [#allocation6], 1
    %386 = vsyncpa %s385, 1
    %387 = vsyncpa [#allocation11], 1
    %s388 = scalar_lea.sflag [#allocation11], 1
    %389 = vsyncpa %s388, 1

</llo_original>
